<compile_context>
chip_gen: v7x
topology: tpu7x:2x2x1
jax: 0.10.0
libtpu: 0.0.40
codegen_flags: <defaults>
</compile_context>

<pallas_src>
import functools

import jax
import jax.numpy as jnp
from jax.experimental import pallas as pl
from jax.experimental.pallas import tpu as pltpu


def _round_up(x, m):
    return ((x + m - 1) // m) * m


# ----------------------------- Pallas kernel ---------------------------------

def _make_mlp_kernel(n_lin):
    """Fused MLP: (n_lin-1) x (dot + bias + ReLU) followed by the output dot + bias.

    Kernel args: x_ref, w0, b0, w1, b1, ..., w_{n-1}, b_{n-1}, o_ref.
    Activations/weights are bf16 (MXU operands); accumulation, bias-add, ReLU and the
    final output are f32.
    """

    def kernel(x_ref, *refs):
        o_ref = refs[-1]
        x = x_ref[...]                                       # (tb, K0) bf16
        for l in range(n_lin):
            w = refs[2 * l][...]                             # (Kl, Nl) bf16
            b = refs[2 * l + 1][...]                         # (1, Nl)  f32
            y = jnp.dot(x, w, preferred_element_type=jnp.float32) + b
            if l + 1 < n_lin:
                x = jnp.maximum(y, 0.0).astype(jnp.bfloat16)  # ReLU(inplace=True)
            else:
                o_ref[...] = y                               # last Linear: no activation

    return kernel


def mlp_pallas(x_pad, weights, biases, *, tb, use_buffered):
    """x_pad: (Bp, K0) bf16; weights[l]: (Kl, Nl) bf16; biases[l]: (1, Nl) f32. Bp % tb == 0."""
    Bp, k0 = x_pad.shape
    n_lin = len(weights)
    out_pad = weights[-1].shape[1]
    grid = (Bp // tb,)

    res_mode = pl.Buffered(1) if use_buffered else None      # weights are grid-resident
    in_specs = [pl.BlockSpec((tb, k0), lambda i: (i, 0))]    # activations: tiled over batch
    operands = [x_pad]
    for w, b in zip(weights, biases):
        in_specs.append(pl.BlockSpec(w.shape, lambda i: (0, 0), pipeline_mode=res_mode))
        in_specs.append(pl.BlockSpec(b.shape, lambda i: (0, 0), pipeline_mode=res_mode))
        operands += [w, b]

    w_bytes = sum(w.size * 2 for w in weights)
    b_bytes = sum(b.size * 4 for b in biases)
    flops = 2 * Bp * sum(w.shape[0] * w.shape[1] for w in weights)
    bytes_accessed = x_pad.size * 2 + Bp * out_pad * 4 + w_bytes + b_bytes

    # VMEM budget: resident weights/biases (x2 if double-buffered), double-buffered
    # activation in/out tiles, widest f32 inter-layer temp; ~40% headroom, <=64 MiB (v7x).
    n_buf = 1 if use_buffered else 2
    max_n = max(w.shape[1] for w in weights)
    vmem_need = (n_buf * (w_bytes + b_bytes)
                 + 2 * tb * k0 * 2 + 2 * tb * out_pad * 4 + 2 * tb * max_n * 4)
    vmem_limit = int(min(max(1.4 * vmem_need, 16 << 20), 64 << 20))

    return pl.pallas_call(
        _make_mlp_kernel(n_lin),
        out_shape=jax.ShapeDtypeStruct((Bp, out_pad), jnp.float32),
        grid=grid,
        in_specs=in_specs,
        out_specs=pl.BlockSpec((tb, out_pad), lambda i: (i, 0)),
        compiler_params=pltpu.CompilerParams(
            dimension_semantics=("parallel",),
            vmem_limit_bytes=vmem_limit),
        cost_estimate=pl.CostEstimate(flops=flops, transcendentals=0,
                                      bytes_accessed=bytes_accessed),
    )(*operands)


# ----------------------------- host-side BN fold + per-layer padding ----------

def fold_and_pad_params(params, eps=1e-5, lane=128):
    """Fold every eval-mode BatchNorm affine into the next Linear, pad each Linear to its
    own 128-lane multiple, quantize weights to bf16 (biases stay f32)."""
    emb_tables = tuple(params["emb_tables"])
    n_emb = sum(t.shape[1] for t in emb_tables)

    g, b, rm, rv = params["bn_cont"]
    sc_cont = g / jnp.sqrt(rv + eps)
    sh_cont = b - rm * sc_cont
    n_cont = g.shape[0]

    # Affine applied to the concatenated [emb | cont] input (identity on the emb part).
    prev_sc = jnp.concatenate([jnp.ones((n_emb,), jnp.float32), sc_cont])
    prev_sh = jnp.concatenate([jnp.zeros((n_emb,), jnp.float32), sh_cont])

    ws, bs = [], []
    for (w, bias, g_l, b_l, rm_l, rv_l) in params["hidden"]:
        ws.append(prev_sc[:, None] * w)          # fold preceding affine into this Linear
        bs.append(prev_sh @ w + bias)
        sc = g_l / jnp.sqrt(rv_l + eps)          # this layer's BN -> folds into next Linear
        sh = b_l - rm_l * sc
        prev_sc, prev_sh = sc, sh

    w_out, b_out = params["w_out"], params["b_out"]
    ws.append(prev_sc[:, None] * w_out)
    bs.append(prev_sh @ w_out + b_out)

    weights, biases = [], []
    for w, bb in zip(ws, bs):
        k, n = w.shape
        kp, npad = _round_up(k, lane), _round_up(n, lane)
        w_pad = jnp.zeros((kp, npad), jnp.float32).at[:k, :n].set(w)
        b_pad = jnp.zeros((1, npad), jnp.float32).at[0, :n].set(bb)
        # Guard (review): pad lanes must be exactly zero so ReLU(0)=0 keeps them dead.
        leak = jnp.any(w_pad[k:, :]) | jnp.any(w_pad[:, n:]) | jnp.any(b_pad[:, n:])
        assert not bool(leak), "non-zero values leaked into padded lanes"
        weights.append(w_pad.astype(jnp.bfloat16))
        biases.append(b_pad)

    return {
        "emb_tables": emb_tables,
        "weights": tuple(weights),
        "biases": tuple(biases),
        "n_in": n_emb + n_cont,
        "out_sz": int(w_out.shape[1]),
    }


# ----------------------------- forward (fused glue + kernel) ------------------

@functools.partial(jax.jit, static_argnames=("out_sz", "tb", "use_buffered"))
def _forward_jit(emb_tables, weights, biases, x_cat, x_cont, *, out_sz, tb, use_buffered):
    # Embedding lookups (gather) + concat with continuous features, all inside one jit.
    embs = [tbl[x_cat[:, i]] for i, tbl in enumerate(emb_tables)]
    x = jnp.concatenate(embs + [x_cont.astype(jnp.float32)], axis=1)

    B, F = x.shape
    k0 = weights[0].shape[0]            # ceil(F_in/128)*128 -- NOT the max hidden width
    Bp = _round_up(B, tb)
    x_pad = jnp.zeros((Bp, k0), jnp.bfloat16).at[:B, :F].set(x.astype(jnp.bfloat16))

    out_pad = mlp_pallas(x_pad, weights, biases, tb=tb, use_buffered=use_buffered)
    return out_pad[:B, :out_sz]


def _default_tb(batch):
    bp = _round_up(batch, 16)                    # bf16 activations: 16-row sublane packing
    if bp <= 32:
        return bp                                # too small to split across grid steps
    if bp < 1024:
        return min(512, _round_up(bp // 2, 16))  # >=2 steps => both TCs busy on v7x
    return 512                                   # large batch: ~85%-of-roofline tiles


_BUFFERED_OK = None   # memo: does this JAX build accept pl.Buffered(1) on pallas_call specs?


def feedforward_nn_forward(packed, x_cat, x_cont, tb=None):
    global _BUFFERED_OK
    if tb is None:
        tb = _default_tb(x_cat.shape[0])
    args = (packed["emb_tables"], packed["weights"], packed["biases"], x_cat, x_cont)
    kw = dict(out_sz=packed["out_sz"], tb=tb)
    if _BUFFERED_OK is None or _BUFFERED_OK:
        try:
            out = _forward_jit(*args, use_buffered=True, **kw)
            _BUFFERED_OK = True
            return out
        except Exception:
            # This JAX build rejects pipeline_mode / Buffered(1): fall back to the
            # default double-buffered resident weights (correctness unchanged).
            _BUFFERED_OK = False
    return _forward_jit(*args, use_buffered=False, **kw)


# ----------------------------- pure-JAX reference (un-folded, f32) ------------

def reference_forward(params, x_cat, x_cont, eps=1e-5):
    embs = [tbl[x_cat[:, i]] for i, tbl in enumerate(params["emb_tables"])]
    x = jnp.concatenate(embs, axis=1)
    g, b, rm, rv = params["bn_cont"]
    xc = (x_cont - rm) / jnp.sqrt(rv + eps) * g + b
    x = jnp.concatenate([x, xc.astype(jnp.float32)], axis=1)
    for (w, bias, g_l, b_l, rm_l, rv_l) in params["hidden"]:
        x = jnp.maximum(x @ w + bias, 0.0)
        x = (x - rm_l) / jnp.sqrt(rv_l + eps) * g_l + b_l
    return x @ params["w_out"] + params["b_out"]


# ----------------------------- deterministic params ---------------------------

def init_params(key, embedding_dim, n_cont, out_sz, layers):
    params = {}
    keys = jax.random.split(key, 4 + len(embedding_dim) + 6 * len(layers) + 2)
    ki = iter(range(len(keys)))

    # Embedding tables ~ N(0, 1) like nn.Embedding default.
    params["emb_tables"] = [
        jax.random.normal(keys[next(ki)], (inp, out), jnp.float32)
        for inp, out in embedding_dim
    ]

    def bn_params(n):
        # Non-trivial gamma/beta/running stats (emulates a trained model); eval semantics only.
        g = 1.0 + 0.1 * jax.random.normal(keys[next(ki)], (n,), jnp.float32)
        b = 0.1 * jax.random.normal(keys[next(ki)], (n,), jnp.float32)
        rm = 0.1 * jax.random.normal(keys[next(ki)], (n,), jnp.float32)
        rv = 1.0 + 0.1 * jax.random.uniform(keys[next(ki)], (n,), jnp.float32)
        return g, b, rm, rv

    params["bn_cont"] = bn_params(n_cont)

    n_emb = sum(out for _, out in embedding_dim)
    n_in = n_emb + n_cont
    hidden = []
    for h in layers:
        bound = 1.0 / float(n_in) ** 0.5
        w = jax.random.uniform(keys[next(ki)], (n_in, h), jnp.float32, -bound, bound)
        bias = jax.random.uniform(keys[next(ki)], (h,), jnp.float32, -bound, bound)
        g_l, b_l, rm_l, rv_l = bn_params(h)
        hidden.append((w, bias, g_l, b_l, rm_l, rv_l))
        n_in = h
    params["hidden"] = hidden

    bound = 1.0 / float(layers[-1]) ** 0.5
    params["w_out"] = jax.random.uniform(keys[next(ki)], (layers[-1], out_sz),
                                         jnp.float32, -bound, bound)
    params["b_out"] = jax.random.uniform(keys[next(ki)], (out_sz,),
                                         jnp.float32, -bound, bound)
    return params


# ----------------------------- main -------------------------------------------

if __name__ == "__main__":
    embedding_dim = [(10, 4), (6, 3), (4, 2)]   # (vocab, emb_dim) per categorical column
    n_cont = 4
    out_sz = 1
    layers = [32, 16]
    batch = 8

    key = jax.random.PRNGKey(0)
    k_p, k_cat, k_cont = jax.random.split(key, 3)

    params = init_params(k_p, embedding_dim, n_cont, out_sz, layers)
    packed = fold_and_pad_params(params)

    cat_keys = jax.random.split(k_cat, len(embedding_dim))
    x_cat = jnp.stack(
        [jax.random.randint(cat_keys[i], (batch,), 0, embedding_dim[i][0], jnp.int32)
         for i in range(len(embedding_dim))], axis=1)           # (batch, n_cat) int32
    x_cont = jax.random.normal(k_cont, (batch, n_cont), jnp.float32)

    out = feedforward_nn_forward(packed, x_cat, x_cont)
    jax.block_until_ready(out)
    assert out.shape == (batch, out_sz), out.shape

    ref = reference_forward(params, x_cat, x_cont)
    # bf16 MXU operands (f32 accumulate) vs. f32 reference -> loosened tolerance.
    assert jnp.allclose(out, ref, rtol=3e-2, atol=3e-2), (out, ref)

    print("KERNEL_OK")
</pallas_src>

<mosaic_0001>
module attributes {stable_mosaic.version = 11 : i64} {
  func.func @kernel(%arg0: i32, %arg1: memref<16x128xbf16, #tpu.memory_space<vmem>>, %arg2: memref<128x128xbf16, #tpu.memory_space<vmem>>, %arg3: memref<1x128xf32, #tpu.memory_space<vmem>>, %arg4: memref<128x128xbf16, #tpu.memory_space<vmem>>, %arg5: memref<1x128xf32, #tpu.memory_space<vmem>>, %arg6: memref<128x128xbf16, #tpu.memory_space<vmem>>, %arg7: memref<1x128xf32, #tpu.memory_space<vmem>>, %arg8: memref<16x128xf32, #tpu.memory_space<vmem>>) attributes {dimension_semantics = [#tpu.dimension_semantics<parallel>], iteration_bounds = array<i64: 1>, scalar_prefetch = 0 : i64, scratch_operands = 0 : i64, tpu.core_type = #tpu.core_type<tc>, window_params = [{transform_indices = @transform_0, window_bounds = array<i64: 16, 128>}, {pipeline_mode = #tpu.pipeline_mode<synchronous>, transform_indices = @transform_1, window_bounds = array<i64: 128, 128>}, {pipeline_mode = #tpu.pipeline_mode<synchronous>, transform_indices = @transform_2, window_bounds = array<i64: 1, 128>}, {pipeline_mode = #tpu.pipeline_mode<synchronous>, transform_indices = @transform_3, window_bounds = array<i64: 128, 128>}, {pipeline_mode = #tpu.pipeline_mode<synchronous>, transform_indices = @transform_4, window_bounds = array<i64: 1, 128>}, {pipeline_mode = #tpu.pipeline_mode<synchronous>, transform_indices = @transform_5, window_bounds = array<i64: 128, 128>}, {pipeline_mode = #tpu.pipeline_mode<synchronous>, transform_indices = @transform_6, window_bounds = array<i64: 1, 128>}, {transform_indices = @transform_7, window_bounds = array<i64: 16, 128>}]} {
    %c0 = arith.constant 0 : index
    %c0_0 = arith.constant 0 : index
    %0 = vector.load %arg1[%c0, %c0_0] : memref<16x128xbf16, #tpu.memory_space<vmem>>, vector<16x128xbf16>
    %c0_1 = arith.constant 0 : index
    %c0_2 = arith.constant 0 : index
    %1 = vector.load %arg2[%c0_1, %c0_2] : memref<128x128xbf16, #tpu.memory_space<vmem>>, vector<128x128xbf16>
    %c0_3 = arith.constant 0 : index
    %c0_4 = arith.constant 0 : index
    %2 = vector.load %arg3[%c0_3, %c0_4] : memref<1x128xf32, #tpu.memory_space<vmem>>, vector<1x128xf32>
    %cst = arith.constant dense<0.000000e+00> : vector<16x128xf32>
    %3 = tpu.matmul %0, %1, %cst {dimension_numbers = #tpu.dot_dimension_numbers<[1], [0], [0], [1], [0, 0, 1, 1], [], []>} : vector<16x128xbf16>, vector<128x128xbf16>, vector<16x128xf32> -> vector<16x128xf32>
    %4 = vector.broadcast %2 : vector<1x128xf32> to vector<16x128xf32>
    %5 = arith.addf %3, %4 : vector<16x128xf32>
    %cst_5 = arith.constant 0.000000e+00 : f32
    %6 = vector.broadcast %cst_5 : f32 to vector<16x128xf32>
    %7 = arith.maximumf %5, %6 : vector<16x128xf32>
    %8 = arith.truncf %7 : vector<16x128xf32> to vector<16x128xbf16>
    %c0_6 = arith.constant 0 : index
    %c0_7 = arith.constant 0 : index
    %9 = vector.load %arg4[%c0_6, %c0_7] : memref<128x128xbf16, #tpu.memory_space<vmem>>, vector<128x128xbf16>
    %c0_8 = arith.constant 0 : index
    %c0_9 = arith.constant 0 : index
    %10 = vector.load %arg5[%c0_8, %c0_9] : memref<1x128xf32, #tpu.memory_space<vmem>>, vector<1x128xf32>
    %cst_10 = arith.constant dense<0.000000e+00> : vector<16x128xf32>
    %11 = tpu.matmul %8, %9, %cst_10 {dimension_numbers = #tpu.dot_dimension_numbers<[1], [0], [0], [1], [0, 0, 1, 1], [], []>} : vector<16x128xbf16>, vector<128x128xbf16>, vector<16x128xf32> -> vector<16x128xf32>
    %12 = vector.broadcast %10 : vector<1x128xf32> to vector<16x128xf32>
    %13 = arith.addf %11, %12 : vector<16x128xf32>
    %cst_11 = arith.constant 0.000000e+00 : f32
    %14 = vector.broadcast %cst_11 : f32 to vector<16x128xf32>
    %15 = arith.maximumf %13, %14 : vector<16x128xf32>
    %16 = arith.truncf %15 : vector<16x128xf32> to vector<16x128xbf16>
    %c0_12 = arith.constant 0 : index
    %c0_13 = arith.constant 0 : index
    %17 = vector.load %arg6[%c0_12, %c0_13] : memref<128x128xbf16, #tpu.memory_space<vmem>>, vector<128x128xbf16>
    %c0_14 = arith.constant 0 : index
    %c0_15 = arith.constant 0 : index
    %18 = vector.load %arg7[%c0_14, %c0_15] : memref<1x128xf32, #tpu.memory_space<vmem>>, vector<1x128xf32>
    %cst_16 = arith.constant dense<0.000000e+00> : vector<16x128xf32>
    %19 = tpu.matmul %16, %17, %cst_16 {dimension_numbers = #tpu.dot_dimension_numbers<[1], [0], [0], [1], [0, 0, 1, 1], [], []>} : vector<16x128xbf16>, vector<128x128xbf16>, vector<16x128xf32> -> vector<16x128xf32>
    %20 = vector.broadcast %18 : vector<1x128xf32> to vector<16x128xf32>
    %21 = arith.addf %19, %20 : vector<16x128xf32>
    %c0_17 = arith.constant 0 : index
    %c0_18 = arith.constant 0 : index
    %22 = vector.load %arg8[%c0_17, %c0_18] : memref<16x128xf32, #tpu.memory_space<vmem>>, vector<16x128xf32>
    tpu.vector_store %arg8[%c0_17, %c0_18], %21 {strides = array<i32>} : memref<16x128xf32, #tpu.memory_space<vmem>>, vector<16x128xf32>,
    return
  }
  func.func @transform_0(%arg0: i32) -> (i32, i32) {
    %c0_i32 = arith.constant 0 : i32
    %c0_i32_0 = arith.constant 0 : i32
    return %arg0, %c0_i32 : i32, i32
  }
  func.func @transform_1(%arg0: i32) -> (i32, i32) {
    %c0_i32 = arith.constant 0 : i32
    %c0_i32_0 = arith.constant 0 : i32
    %c0_i32_1 = arith.constant 0 : i32
    return %c0_i32, %c0_i32_0 : i32, i32
  }
  func.func @transform_2(%arg0: i32) -> (i32, i32) {
    %c0_i32 = arith.constant 0 : i32
    %c0_i32_0 = arith.constant 0 : i32
    %c0_i32_1 = arith.constant 0 : i32
    return %c0_i32, %c0_i32_0 : i32, i32
  }
  func.func @transform_3(%arg0: i32) -> (i32, i32) {
    %c0_i32 = arith.constant 0 : i32
    %c0_i32_0 = arith.constant 0 : i32
    %c0_i32_1 = arith.constant 0 : i32
    return %c0_i32, %c0_i32_0 : i32, i32
  }
  func.func @transform_4(%arg0: i32) -> (i32, i32) {
    %c0_i32 = arith.constant 0 : i32
    %c0_i32_0 = arith.constant 0 : i32
    %c0_i32_1 = arith.constant 0 : i32
    return %c0_i32, %c0_i32_0 : i32, i32
  }
  func.func @transform_5(%arg0: i32) -> (i32, i32) {
    %c0_i32 = arith.constant 0 : i32
    %c0_i32_0 = arith.constant 0 : i32
    %c0_i32_1 = arith.constant 0 : i32
    return %c0_i32, %c0_i32_0 : i32, i32
  }
  func.func @transform_6(%arg0: i32) -> (i32, i32) {
    %c0_i32 = arith.constant 0 : i32
    %c0_i32_0 = arith.constant 0 : i32
    %c0_i32_1 = arith.constant 0 : i32
    return %c0_i32, %c0_i32_0 : i32, i32
  }
  func.func @transform_7(%arg0: i32) -> (i32, i32) {
    %c0_i32 = arith.constant 0 : i32
    %c0_i32_0 = arith.constant 0 : i32
    return %arg0, %c0_i32 : i32, i32
  }
}

module attributes {stable_mosaic.version = 11 : i64} {
  func.func @kernel(%arg0: i32, %arg1: memref<16x128xbf16, #tpu.memory_space<vmem>>, %arg2: memref<128x128xbf16, #tpu.memory_space<vmem>>, %arg3: memref<1x128xf32, #tpu.memory_space<vmem>>, %arg4: memref<128x128xbf16, #tpu.memory_space<vmem>>, %arg5: memref<1x128xf32, #tpu.memory_space<vmem>>, %arg6: memref<128x128xbf16, #tpu.memory_space<vmem>>, %arg7: memref<1x128xf32, #tpu.memory_space<vmem>>, %arg8: memref<16x128xf32, #tpu.memory_space<vmem>>) attributes {dimension_semantics = [#tpu.dimension_semantics<parallel>], iteration_bounds = array<i64: 1>, scalar_prefetch = 0 : i64, scratch_operands = 0 : i64, tpu.core_type = #tpu.core_type<tc>, window_params = [{transform_indices = @transform_0, window_bounds = array<i64: 16, 128>}, {pipeline_mode = #tpu.pipeline_mode<synchronous>, transform_indices = @transform_1, window_bounds = array<i64: 128, 128>}, {pipeline_mode = #tpu.pipeline_mode<synchronous>, transform_indices = @transform_2, window_bounds = array<i64: 1, 128>}, {pipeline_mode = #tpu.pipeline_mode<synchronous>, transform_indices = @transform_3, window_bounds = array<i64: 128, 128>}, {pipeline_mode = #tpu.pipeline_mode<synchronous>, transform_indices = @transform_4, window_bounds = array<i64: 1, 128>}, {pipeline_mode = #tpu.pipeline_mode<synchronous>, transform_indices = @transform_5, window_bounds = array<i64: 128, 128>}, {pipeline_mode = #tpu.pipeline_mode<synchronous>, transform_indices = @transform_6, window_bounds = array<i64: 1, 128>}, {transform_indices = @transform_7, window_bounds = array<i64: 16, 128>}]} {
    %c0 = arith.constant 0 : index
    %c0_0 = arith.constant 0 : index
    %0 = vector.load %arg1[%c0, %c0_0] : memref<16x128xbf16, #tpu.memory_space<vmem>>, vector<16x128xbf16>
    %c0_1 = arith.constant 0 : index
    %c0_2 = arith.constant 0 : index
    %1 = vector.load %arg2[%c0_1, %c0_2] : memref<128x128xbf16, #tpu.memory_space<vmem>>, vector<128x128xbf16>
    %c0_3 = arith.constant 0 : index
    %c0_4 = arith.constant 0 : index
    %2 = vector.load %arg3[%c0_3, %c0_4] : memref<1x128xf32, #tpu.memory_space<vmem>>, vector<1x128xf32>
    %cst = arith.constant dense<0.000000e+00> : vector<16x128xf32>
    %3 = tpu.matmul %0, %1, %cst {dimension_numbers = #tpu.dot_dimension_numbers<[1], [0], [0], [1], [0, 0, 1, 1], [], []>} : vector<16x128xbf16>, vector<128x128xbf16>, vector<16x128xf32> -> vector<16x128xf32>
    %4 = vector.broadcast %2 : vector<1x128xf32> to vector<16x128xf32>
    %5 = arith.addf %3, %4 : vector<16x128xf32>
    %cst_5 = arith.constant 0.000000e+00 : f32
    %6 = vector.broadcast %cst_5 : f32 to vector<16x128xf32>
    %7 = arith.maximumf %5, %6 : vector<16x128xf32>
    %8 = arith.truncf %7 : vector<16x128xf32> to vector<16x128xbf16>
    %c0_6 = arith.constant 0 : index
    %c0_7 = arith.constant 0 : index
    %9 = vector.load %arg4[%c0_6, %c0_7] : memref<128x128xbf16, #tpu.memory_space<vmem>>, vector<128x128xbf16>
    %c0_8 = arith.constant 0 : index
    %c0_9 = arith.constant 0 : index
    %10 = vector.load %arg5[%c0_8, %c0_9] : memref<1x128xf32, #tpu.memory_space<vmem>>, vector<1x128xf32>
    %cst_10 = arith.constant dense<0.000000e+00> : vector<16x128xf32>
    %11 = tpu.matmul %8, %9, %cst_10 {dimension_numbers = #tpu.dot_dimension_numbers<[1], [0], [0], [1], [0, 0, 1, 1], [], []>} : vector<16x128xbf16>, vector<128x128xbf16>, vector<16x128xf32> -> vector<16x128xf32>
    %12 = vector.broadcast %10 : vector<1x128xf32> to vector<16x128xf32>
    %13 = arith.addf %11, %12 : vector<16x128xf32>
    %cst_11 = arith.constant 0.000000e+00 : f32
    %14 = vector.broadcast %cst_11 : f32 to vector<16x128xf32>
    %15 = arith.maximumf %13, %14 : vector<16x128xf32>
    %16 = arith.truncf %15 : vector<16x128xf32> to vector<16x128xbf16>
    %c0_12 = arith.constant 0 : index
    %c0_13 = arith.constant 0 : index
    %17 = vector.load %arg6[%c0_12, %c0_13] : memref<128x128xbf16, #tpu.memory_space<vmem>>, vector<128x128xbf16>
    %c0_14 = arith.constant 0 : index
    %c0_15 = arith.constant 0 : index
    %18 = vector.load %arg7[%c0_14, %c0_15] : memref<1x128xf32, #tpu.memory_space<vmem>>, vector<1x128xf32>
    %cst_16 = arith.constant dense<0.000000e+00> : vector<16x128xf32>
    %19 = tpu.matmul %16, %17, %cst_16 {dimension_numbers = #tpu.dot_dimension_numbers<[1], [0], [0], [1], [0, 0, 1, 1], [], []>} : vector<16x128xbf16>, vector<128x128xbf16>, vector<16x128xf32> -> vector<16x128xf32>
    %20 = vector.broadcast %18 : vector<1x128xf32> to vector<16x128xf32>
    %21 = arith.addf %19, %20 : vector<16x128xf32>
    %c0_17 = arith.constant 0 : index
    %c0_18 = arith.constant 0 : index
    %22 = vector.load %arg8[%c0_17, %c0_18] : memref<16x128xf32, #tpu.memory_space<vmem>>, vector<16x128xf32>
    tpu.vector_store %arg8[%c0_17, %c0_18], %21 {strides = array<i32>} : memref<16x128xf32, #tpu.memory_space<vmem>>, vector<16x128xf32>,
    return
  }
  func.func @transform_0(%arg0: i32) -> (i32, i32) {
    %c0_i32 = arith.constant 0 : i32
    %c0_i32_0 = arith.constant 0 : i32
    return %arg0, %c0_i32 : i32, i32
  }
  func.func @transform_1(%arg0: i32) -> (i32, i32) {
    %c0_i32 = arith.constant 0 : i32
    %c0_i32_0 = arith.constant 0 : i32
    %c0_i32_1 = arith.constant 0 : i32
    return %c0_i32, %c0_i32_0 : i32, i32
  }
  func.func @transform_2(%arg0: i32) -> (i32, i32) {
    %c0_i32 = arith.constant 0 : i32
    %c0_i32_0 = arith.constant 0 : i32
    %c0_i32_1 = arith.constant 0 : i32
    return %c0_i32, %c0_i32_0 : i32, i32
  }
  func.func @transform_3(%arg0: i32) -> (i32, i32) {
    %c0_i32 = arith.constant 0 : i32
    %c0_i32_0 = arith.constant 0 : i32
    %c0_i32_1 = arith.constant 0 : i32
    return %c0_i32, %c0_i32_0 : i32, i32
  }
  func.func @transform_4(%arg0: i32) -> (i32, i32) {
    %c0_i32 = arith.constant 0 : i32
    %c0_i32_0 = arith.constant 0 : i32
    %c0_i32_1 = arith.constant 0 : i32
    return %c0_i32, %c0_i32_0 : i32, i32
  }
  func.func @transform_5(%arg0: i32) -> (i32, i32) {
    %c0_i32 = arith.constant 0 : i32
    %c0_i32_0 = arith.constant 0 : i32
    %c0_i32_1 = arith.constant 0 : i32
    return %c0_i32, %c0_i32_0 : i32, i32
  }
  func.func @transform_6(%arg0: i32) -> (i32, i32) {
    %c0_i32 = arith.constant 0 : i32
    %c0_i32_0 = arith.constant 0 : i32
    %c0_i32_1 = arith.constant 0 : i32
    return %c0_i32, %c0_i32_0 : i32, i32
  }
  func.func @transform_7(%arg0: i32) -> (i32, i32) {
    %c0_i32 = arith.constant 0 : i32
    %c0_i32_0 = arith.constant 0 : i32
    return %arg0, %c0_i32 : i32, i32
  }
}

</mosaic_0001>

<llo_original>
// kernel: _forward_jit.1
$region0: #{_forward_jit.1}
  #allocation0 [shape = 'u32[]', space=smem, size = 0x4, offset = 0x4, fixed_abs, tag = 'smem constant byte address 0x4 - core index']
  #allocation1 [shape = 'u32[144,128]{1,0:T(1,128)}', space=vmem, size = 0x12000, scoped, tag = 'internal scratch']
  %s0 = inlined_call_operand.vmem [shape: bf16[16,128], index: 0, kind: input, shape index: {}]
  %s1 = inlined_call_operand.vmem [shape: bf16[128,128], index: 1, kind: input, shape index: {}]
  %s2 = inlined_call_operand.vmem [shape: f32[1,128], index: 2, kind: input, shape index: {}]
  %s3 = inlined_call_operand.vmem [shape: bf16[128,128], index: 3, kind: input, shape index: {}]
  %s4 = inlined_call_operand.vmem [shape: f32[1,128], index: 4, kind: input, shape index: {}]
  %s5 = inlined_call_operand.vmem [shape: bf16[128,128], index: 5, kind: input, shape index: {}]
  %s6 = inlined_call_operand.vmem [shape: f32[1,128], index: 6, kind: input, shape index: {}]
  %s7 = inlined_call_operand.vmem [shape: f32[16,128], index: 7, kind: output, shape index: {}]
  %s8 = sld [smem:[#allocation0]]
  $region38: #{_forward_jit.1} parent=0
    _
  %s10 = ssub.s32 1, %s8
  %s11 = scalar_select 0, %s10, %s8
  // Predicated region
  $region2: #{_forward_jit.1} parent=0 // pred_check
    _
  $region3: #{_forward_jit.1} parent=0 // pred_check_branch
    %13 = sbr.rel (0) target = $region5
  $region4: #{_forward_jit.1} parent=0 // pred_region
    _
  $region5: #{_forward_jit.1} parent=0 // pred_fallthru
    _
  // Predicated region
  $region6: #{_forward_jit.1} parent=0 // pred_check
    _
  $region7: #{_forward_jit.1} parent=0 // pred_check_branch
    %15 = sbr.rel (0) target = $region9
  $region8: #{_forward_jit.1} parent=0 // pred_region
    _
  $region9: #{_forward_jit.1} parent=0 // pred_fallthru
    _
  // Predicated region
  $region10: #{_forward_jit.1} parent=0 // pred_check
    _
  $region11: #{_forward_jit.1} parent=0 // pred_check_branch
    %17 = sbr.rel (0) target = $region13
  $region12: #{_forward_jit.1} parent=0 // pred_region
    _
  $region13: #{_forward_jit.1} parent=0 // pred_fallthru
    _
  // Predicated region
  $region14: #{_forward_jit.1} parent=0 // pred_check
    _
  $region15: #{_forward_jit.1} parent=0 // pred_check_branch
    %19 = sbr.rel (0) target = $region17
  $region16: #{_forward_jit.1} parent=0 // pred_region
    _
  $region17: #{_forward_jit.1} parent=0 // pred_fallthru
    _
  // Predicated region
  $region18: #{_forward_jit.1} parent=0 // pred_check
    _
  $region19: #{_forward_jit.1} parent=0 // pred_check_branch
    %21 = sbr.rel (0) target = $region21
  $region20: #{_forward_jit.1} parent=0 // pred_region
    _
  $region21: #{_forward_jit.1} parent=0 // pred_fallthru
    _
  // Predicated region
  $region22: #{_forward_jit.1} parent=0 // pred_check
    _
  $region23: #{_forward_jit.1} parent=0 // pred_check_branch
    %23 = sbr.rel (0) target = $region25
  $region24: #{_forward_jit.1} parent=0 // pred_region
    _
  $region25: #{_forward_jit.1} parent=0 // pred_fallthru
    _
  // Predicated region
  $region26: #{_forward_jit.1} parent=0 // pred_check
    _
  $region27: #{_forward_jit.1} parent=0 // pred_check_branch
    %25 = sbr.rel (0) target = $region29
  $region28: #{_forward_jit.1} parent=0 // pred_region
    _
  $region29: #{_forward_jit.1} parent=0 // pred_fallthru
    _
  %v27 = vld [vmem:[%s0] sm:$0xf]
  %v28 = vld [vmem:[%s0 + $0x4] sm:$0xf]
  %v29 = vld [vmem:[%s1] sm:$0xf]
  %v30 = vld [vmem:[%s1 + $0x4] sm:$0xf]
  %v31 = vld [vmem:[%s1 + $0x8] sm:$0xf]
  %v32 = vld [vmem:[%s1 + $0xc] sm:$0xf]
  %v33 = vld [vmem:[%s1 + $0x10] sm:$0xf]
  %v34 = vld [vmem:[%s1 + $0x14] sm:$0xf]
  %v35 = vld [vmem:[%s1 + $0x18] sm:$0xf]
  %v36 = vld [vmem:[%s1 + $0x1c] sm:$0xf]
  %v37 = vld [vmem:[%s1 + $0x20] sm:$0xf]
  %v38 = vld [vmem:[%s1 + $0x24] sm:$0xf]
  %v39 = vld [vmem:[%s1 + $0x28] sm:$0xf]
  %v40 = vld [vmem:[%s1 + $0x2c] sm:$0xf]
  %v41 = vld [vmem:[%s1 + $0x30] sm:$0xf]
  %v42 = vld [vmem:[%s1 + $0x34] sm:$0xf]
  %v43 = vld [vmem:[%s1 + $0x38] sm:$0xf]
  %v44 = vld [vmem:[%s1 + $0x3c] sm:$0xf]
  %v45 = vld [vmem:[%s2] sm:$0x1]
  %v47 = vlaneseq
  %v48 = vshrl.u32 %v47, 7
  %v49 = vsub.s32 0, %v48
  %v50 = vrot.slane %v45, %v49
  %v54 = vunpack.c.l.b16 %v27
  %v55 = vunpack.c.l.b16 %v28
  %v56 = vpack.c.b16 %v55, %v54
  %v74 = vunpack.c.l.b16 %v29
  %v75 = vunpack.c.l.b16 %v30
  %v76 = vunpack.c.l.b16 %v31
  %v77 = vunpack.c.l.b16 %v32
  %v78 = vunpack.c.l.b16 %v33
  %v79 = vunpack.c.l.b16 %v34
  %v80 = vunpack.c.l.b16 %v35
  %v81 = vunpack.c.l.b16 %v36
  %v82 = vunpack.c.l.b16 %v37
  %v83 = vunpack.c.l.b16 %v38
  %v84 = vunpack.c.l.b16 %v39
  %v85 = vunpack.c.l.b16 %v40
  %v86 = vunpack.c.l.b16 %v41
  %v87 = vunpack.c.l.b16 %v42
  %v88 = vunpack.c.l.b16 %v43
  %v89 = vunpack.c.l.b16 %v44
  %v90 = vpack.c.b16 %v75, %v74
  %v91 = vpack.c.b16 %v77, %v76
  %v92 = vpack.c.b16 %v79, %v78
  %v93 = vpack.c.b16 %v81, %v80
  %v94 = vpack.c.b16 %v83, %v82
  %v95 = vpack.c.b16 %v85, %v84
  %v96 = vpack.c.b16 %v87, %v86
  %v97 = vpack.c.b16 %v89, %v88
  %106 = vmatprep.subr.bf16.mxu0 0
  %107 = vmatpush1.bf16.msra.mxu0 %v90
  %108 = vmatprep.subr.bf16.mxu0 0
  %109 = vmatpush1.bf16.msra.mxu0 %v91
  %110 = vmatprep.subr.bf16.mxu0 0
  %111 = vmatpush1.bf16.msra.mxu0 %v92
  %112 = vmatprep.subr.bf16.mxu0 0
  %113 = vmatpush1.bf16.msra.mxu0 %v93
  %114 = vmatprep.subr.bf16.mxu0 0
  %115 = vmatpush1.bf16.msra.mxu0 %v94
  %116 = vmatprep.subr.bf16.mxu0 0
  %117 = vmatpush1.bf16.msra.mxu0 %v95
  %118 = vmatprep.subr.bf16.mxu0 0
  %119 = vmatpush1.bf16.msra.mxu0 %v96
  %120 = vmatprep.subr.bf16.mxu0 0
  %121 = vmatpush1.bf16.msra.mxu0 %v97
  %122 = vmatprep.subr.bf16.mxu0 0
  %123 = vmatpush1.bf16.msra.mxu0 0
  %124 = vmatprep.subr.bf16.mxu0 0
  %125 = vmatpush1.bf16.msra.mxu0 0
  %126 = vmatprep.subr.bf16.mxu0 0
  %127 = vmatpush1.bf16.msra.mxu0 0
  %128 = vmatprep.subr.bf16.mxu0 0
  %129 = vmatpush1.bf16.msra.mxu0 0
  %130 = vmatprep.subr.bf16.mxu0 0
  %131 = vmatpush1.bf16.msra.mxu0 0
  %132 = vmatprep.subr.bf16.mxu0 0
  %133 = vmatpush1.bf16.msra.mxu0 0
  %134 = vmatprep.subr.bf16.mxu0 0
  %135 = vmatpush1.bf16.msra.mxu0 0
  %136 = vmatprep.subr.bf16.mxu0 0
  %137 = vmatpush1.bf16.msra.mxu0 0
  %138 = vmatprep.mubr.bf16.mxu0 0
  %139 = vmatmul.mubr.bf16.gmra.mrb[0].mxu0 %v56
  %v140 = vpop.f32.mrb[0].mxu0
  %v141 = vadd.f32 %v50, %v140
  %v142 = vpop.f32.mrb[0].mxu0
  %v143 = vpop.f32.mrb[0].mxu0
  %v144 = vadd.f32 %v50, %v143
  %v145 = vpop.f32.mrb[0].mxu0
  %146 = vdwg.mxu0
  %v147 = vmax.f32 %v141, 0.0
  %v148 = vmax.f32 %v144, 0.0
  %v149 = vpack.c.bf16 %v148, %v147
  %v150 = vld [vmem:[%s3] sm:$0xf]
  %v151 = vld [vmem:[%s3 + $0x4] sm:$0xf]
  %v152 = vld [vmem:[%s3 + $0x8] sm:$0xf]
  %v153 = vld [vmem:[%s3 + $0xc] sm:$0xf]
  %v154 = vld [vmem:[%s3 + $0x10] sm:$0xf]
  %v155 = vld [vmem:[%s3 + $0x14] sm:$0xf]
  %v156 = vld [vmem:[%s3 + $0x18] sm:$0xf]
  %v157 = vld [vmem:[%s3 + $0x1c] sm:$0xf]
  %v158 = vld [vmem:[%s3 + $0x20] sm:$0xf]
  %v159 = vld [vmem:[%s3 + $0x24] sm:$0xf]
  %v160 = vld [vmem:[%s3 + $0x28] sm:$0xf]
  %v161 = vld [vmem:[%s3 + $0x2c] sm:$0xf]
  %v162 = vld [vmem:[%s3 + $0x30] sm:$0xf]
  %v163 = vld [vmem:[%s3 + $0x34] sm:$0xf]
  %v164 = vld [vmem:[%s3 + $0x38] sm:$0xf]
  %v165 = vld [vmem:[%s3 + $0x3c] sm:$0xf]
  %v166 = vld [vmem:[%s4] sm:$0x1]
  %v168 = vlaneseq
  %v169 = vshrl.u32 %v168, 7
  %v170 = vsub.s32 0, %v169
  %v171 = vrot.slane %v166, %v170
  %v189 = vunpack.c.l.b16 %v150
  %v190 = vunpack.c.l.b16 %v151
  %v191 = vunpack.c.l.b16 %v152
  %v192 = vunpack.c.l.b16 %v153
  %v193 = vunpack.c.l.b16 %v154
  %v194 = vunpack.c.l.b16 %v155
  %v195 = vunpack.c.l.b16 %v156
  %v196 = vunpack.c.l.b16 %v157
  %v197 = vunpack.c.l.b16 %v158
  %v198 = vunpack.c.l.b16 %v159
  %v199 = vunpack.c.l.b16 %v160
  %v200 = vunpack.c.l.b16 %v161
  %v201 = vunpack.c.l.b16 %v162
  %v202 = vunpack.c.l.b16 %v163
  %v203 = vunpack.c.l.b16 %v164
  %v204 = vunpack.c.l.b16 %v165
  %v205 = vpack.c.b16 %v190, %v189
  %v206 = vpack.c.b16 %v192, %v191
  %v207 = vpack.c.b16 %v194, %v193
  %v208 = vpack.c.b16 %v196, %v195
  %v209 = vpack.c.b16 %v198, %v197
  %v210 = vpack.c.b16 %v200, %v199
  %v211 = vpack.c.b16 %v202, %v201
  %v212 = vpack.c.b16 %v204, %v203
  %221 = vmatprep.subr.bf16.mxu0 0
  %222 = vmatpush1.bf16.msra.mxu0 %v205
  %223 = vmatprep.subr.bf16.mxu0 0
  %224 = vmatpush1.bf16.msra.mxu0 %v206
  %225 = vmatprep.subr.bf16.mxu0 0
  %226 = vmatpush1.bf16.msra.mxu0 %v207
  %227 = vmatprep.subr.bf16.mxu0 0
  %228 = vmatpush1.bf16.msra.mxu0 %v208
  %229 = vmatprep.subr.bf16.mxu0 0
  %230 = vmatpush1.bf16.msra.mxu0 %v209
  %231 = vmatprep.subr.bf16.mxu0 0
  %232 = vmatpush1.bf16.msra.mxu0 %v210
  %233 = vmatprep.subr.bf16.mxu0 0
  %234 = vmatpush1.bf16.msra.mxu0 %v211
  %235 = vmatprep.subr.bf16.mxu0 0
  %236 = vmatpush1.bf16.msra.mxu0 %v212
  %237 = vmatprep.subr.bf16.mxu0 0
  %238 = vmatpush1.bf16.msra.mxu0 0
  %239 = vmatprep.subr.bf16.mxu0 0
  %240 = vmatpush1.bf16.msra.mxu0 0
  %241 = vmatprep.subr.bf16.mxu0 0
  %242 = vmatpush1.bf16.msra.mxu0 0
  %243 = vmatprep.subr.bf16.mxu0 0
  %244 = vmatpush1.bf16.msra.mxu0 0
  %245 = vmatprep.subr.bf16.mxu0 0
  %246 = vmatpush1.bf16.msra.mxu0 0
  %247 = vmatprep.subr.bf16.mxu0 0
  %248 = vmatpush1.bf16.msra.mxu0 0
  %249 = vmatprep.subr.bf16.mxu0 0
  %250 = vmatpush1.bf16.msra.mxu0 0
  %251 = vmatprep.subr.bf16.mxu0 0
  %252 = vmatpush1.bf16.msra.mxu0 0
  %253 = vmatprep.mubr.bf16.mxu0 0
  %254 = vmatmul.mubr.bf16.gmra.mrb[0].mxu0 %v149
  %v255 = vpop.f32.mrb[0].mxu0
  %v256 = vadd.f32 %v171, %v255
  %v257 = vpop.f32.mrb[0].mxu0
  %v258 = vpop.f32.mrb[0].mxu0
  %v259 = vadd.f32 %v171, %v258
  %v260 = vpop.f32.mrb[0].mxu0
  %261 = vdwg.mxu0
  %v262 = vmax.f32 %v256, 0.0
  %v263 = vmax.f32 %v259, 0.0
  %v264 = vpack.c.bf16 %v263, %v262
  %v265 = vld [vmem:[%s5] sm:$0xf]
  %v266 = vld [vmem:[%s5 + $0x4] sm:$0xf]
  %v267 = vld [vmem:[%s5 + $0x8] sm:$0xf]
  %v268 = vld [vmem:[%s5 + $0xc] sm:$0xf]
  %v269 = vld [vmem:[%s5 + $0x10] sm:$0xf]
  %v270 = vld [vmem:[%s5 + $0x14] sm:$0xf]
  %v271 = vld [vmem:[%s5 + $0x18] sm:$0xf]
  %v272 = vld [vmem:[%s5 + $0x1c] sm:$0xf]
  %v273 = vld [vmem:[%s5 + $0x20] sm:$0xf]
  %v274 = vld [vmem:[%s5 + $0x24] sm:$0xf]
  %v275 = vld [vmem:[%s5 + $0x28] sm:$0xf]
  %v276 = vld [vmem:[%s5 + $0x2c] sm:$0xf]
  %v277 = vld [vmem:[%s5 + $0x30] sm:$0xf]
  %v278 = vld [vmem:[%s5 + $0x34] sm:$0xf]
  %v279 = vld [vmem:[%s5 + $0x38] sm:$0xf]
  %v280 = vld [vmem:[%s5 + $0x3c] sm:$0xf]
  %v281 = vld [vmem:[%s6] sm:$0x1]
  %v283 = vlaneseq
  %v284 = vshrl.u32 %v283, 7
  %v285 = vsub.s32 0, %v284
  %v286 = vrot.slane %v281, %v285
  %v304 = vunpack.c.l.b16 %v265
  %v305 = vunpack.c.l.b16 %v266
  %v306 = vunpack.c.l.b16 %v267
  %v307 = vunpack.c.l.b16 %v268
  %v308 = vunpack.c.l.b16 %v269
  %v309 = vunpack.c.l.b16 %v270
  %v310 = vunpack.c.l.b16 %v271
  %v311 = vunpack.c.l.b16 %v272
  %v312 = vunpack.c.l.b16 %v273
  %v313 = vunpack.c.l.b16 %v274
  %v314 = vunpack.c.l.b16 %v275
  %v315 = vunpack.c.l.b16 %v276
  %v316 = vunpack.c.l.b16 %v277
  %v317 = vunpack.c.l.b16 %v278
  %v318 = vunpack.c.l.b16 %v279
  %v319 = vunpack.c.l.b16 %v280
  %v320 = vpack.c.b16 %v305, %v304
  %v321 = vpack.c.b16 %v307, %v306
  %v322 = vpack.c.b16 %v309, %v308
  %v323 = vpack.c.b16 %v311, %v310
  %v324 = vpack.c.b16 %v313, %v312
  %v325 = vpack.c.b16 %v315, %v314
  %v326 = vpack.c.b16 %v317, %v316
  %v327 = vpack.c.b16 %v319, %v318
  %336 = vmatprep.subr.bf16.mxu0 0
  %337 = vmatpush1.bf16.msra.mxu0 %v320
  %338 = vmatprep.subr.bf16.mxu0 0
  %339 = vmatpush1.bf16.msra.mxu0 %v321
  %340 = vmatprep.subr.bf16.mxu0 0
  %341 = vmatpush1.bf16.msra.mxu0 %v322
  %342 = vmatprep.subr.bf16.mxu0 0
  %343 = vmatpush1.bf16.msra.mxu0 %v323
  %344 = vmatprep.subr.bf16.mxu0 0
  %345 = vmatpush1.bf16.msra.mxu0 %v324
  %346 = vmatprep.subr.bf16.mxu0 0
  %347 = vmatpush1.bf16.msra.mxu0 %v325
  %348 = vmatprep.subr.bf16.mxu0 0
  %349 = vmatpush1.bf16.msra.mxu0 %v326
  %350 = vmatprep.subr.bf16.mxu0 0
  %351 = vmatpush1.bf16.msra.mxu0 %v327
  %352 = vmatprep.subr.bf16.mxu0 0
  %353 = vmatpush1.bf16.msra.mxu0 0
  %354 = vmatprep.subr.bf16.mxu0 0
  %355 = vmatpush1.bf16.msra.mxu0 0
  %356 = vmatprep.subr.bf16.mxu0 0
  %357 = vmatpush1.bf16.msra.mxu0 0
  %358 = vmatprep.subr.bf16.mxu0 0
  %359 = vmatpush1.bf16.msra.mxu0 0
  %360 = vmatprep.subr.bf16.mxu0 0
  %361 = vmatpush1.bf16.msra.mxu0 0
  %362 = vmatprep.subr.bf16.mxu0 0
  %363 = vmatpush1.bf16.msra.mxu0 0
  %364 = vmatprep.subr.bf16.mxu0 0
  %365 = vmatpush1.bf16.msra.mxu0 0
  %366 = vmatprep.subr.bf16.mxu0 0
  %367 = vmatpush1.bf16.msra.mxu0 0
  %368 = vmatprep.mubr.bf16.mxu0 0
  %369 = vmatmul.mubr.bf16.gmra.mrb[0].mxu0 %v264
  %v370 = vpop.f32.mrb[0].mxu0
  %v371 = vadd.f32 %v286, %v370
  %v372 = vpop.f32.mrb[0].mxu0
  %v373 = vpop.f32.mrb[0].mxu0
  %v374 = vadd.f32 %v286, %v373
  %v375 = vpop.f32.mrb[0].mxu0
  %376 = vdwg.mxu0
  %377 = vst [vmem:[%s7] sm:$0xff] %v371
  %378 = vst [vmem:[%s7 + $0x8] sm:$0xff] %v374
  // Predicated region
  $region30: #{_forward_jit.1} parent=0 // pred_check
    _
  $region31: #{_forward_jit.1} parent=0 // pred_check_branch
    %380 = sbr.rel (0) target = $region33
  $region32: #{_forward_jit.1} parent=0 // pred_region
    _
  $region33: #{_forward_jit.1} parent=0 // pred_fallthru
    _
  // Predicated region
  $region34: #{_forward_jit.1} parent=0 // pred_check
    _
  $region35: #{_forward_jit.1} parent=0 // pred_check_branch
    %382 = sbr.rel (0) target = $region37
  $region36: #{_forward_jit.1} parent=0 // pred_region
    _
  $region37: #{_forward_jit.1} parent=0 // pred_fallthru
    _

// kernel: _forward_jit.1
$region0: #{_forward_jit.1}
  #allocation0 [shape = 'u32[]', space=smem, size = 0x4, offset = 0x4, fixed_abs, tag = 'smem constant byte address 0x4 - core index']
  #allocation1 [shape = 'u32[144,128]{1,0:T(1,128)}', space=vmem, size = 0x12000, scoped, tag = 'internal scratch']
  %s0 = inlined_call_operand.vmem [shape: bf16[16,128], index: 0, kind: input, shape index: {}]
  %s1 = inlined_call_operand.vmem [shape: bf16[128,128], index: 1, kind: input, shape index: {}]
  %s2 = inlined_call_operand.vmem [shape: f32[1,128], index: 2, kind: input, shape index: {}]
  %s3 = inlined_call_operand.vmem [shape: bf16[128,128], index: 3, kind: input, shape index: {}]
  %s4 = inlined_call_operand.vmem [shape: f32[1,128], index: 4, kind: input, shape index: {}]
  %s5 = inlined_call_operand.vmem [shape: bf16[128,128], index: 5, kind: input, shape index: {}]
  %s6 = inlined_call_operand.vmem [shape: f32[1,128], index: 6, kind: input, shape index: {}]
  %s7 = inlined_call_operand.vmem [shape: f32[16,128], index: 7, kind: output, shape index: {}]
  %s8 = sld [smem:[#allocation0]]
  $region38: #{_forward_jit.1} parent=0
    _
  %s10 = ssub.s32 1, %s8
  %s11 = scalar_select 0, %s10, %s8
  // Predicated region
  $region2: #{_forward_jit.1} parent=0 // pred_check
    _
  $region3: #{_forward_jit.1} parent=0 // pred_check_branch
    %13 = sbr.rel (0) target = $region5
  $region4: #{_forward_jit.1} parent=0 // pred_region
    _
  $region5: #{_forward_jit.1} parent=0 // pred_fallthru
    _
  // Predicated region
  $region6: #{_forward_jit.1} parent=0 // pred_check
    _
  $region7: #{_forward_jit.1} parent=0 // pred_check_branch
    %15 = sbr.rel (0) target = $region9
  $region8: #{_forward_jit.1} parent=0 // pred_region
    _
  $region9: #{_forward_jit.1} parent=0 // pred_fallthru
    _
  // Predicated region
  $region10: #{_forward_jit.1} parent=0 // pred_check
    _
  $region11: #{_forward_jit.1} parent=0 // pred_check_branch
    %17 = sbr.rel (0) target = $region13
  $region12: #{_forward_jit.1} parent=0 // pred_region
    _
  $region13: #{_forward_jit.1} parent=0 // pred_fallthru
    _
  // Predicated region
  $region14: #{_forward_jit.1} parent=0 // pred_check
    _
  $region15: #{_forward_jit.1} parent=0 // pred_check_branch
    %19 = sbr.rel (0) target = $region17
  $region16: #{_forward_jit.1} parent=0 // pred_region
    _
  $region17: #{_forward_jit.1} parent=0 // pred_fallthru
    _
  // Predicated region
  $region18: #{_forward_jit.1} parent=0 // pred_check
    _
  $region19: #{_forward_jit.1} parent=0 // pred_check_branch
    %21 = sbr.rel (0) target = $region21
  $region20: #{_forward_jit.1} parent=0 // pred_region
    _
  $region21: #{_forward_jit.1} parent=0 // pred_fallthru
    _
  // Predicated region
  $region22: #{_forward_jit.1} parent=0 // pred_check
    _
  $region23: #{_forward_jit.1} parent=0 // pred_check_branch
    %23 = sbr.rel (0) target = $region25
  $region24: #{_forward_jit.1} parent=0 // pred_region
    _
  $region25: #{_forward_jit.1} parent=0 // pred_fallthru
    _
  // Predicated region
  $region26: #{_forward_jit.1} parent=0 // pred_check
    _
  $region27: #{_forward_jit.1} parent=0 // pred_check_branch
    %25 = sbr.rel (0) target = $region29
  $region28: #{_forward_jit.1} parent=0 // pred_region
    _
  $region29: #{_forward_jit.1} parent=0 // pred_fallthru
    _
  %v27 = vld [vmem:[%s0] sm:$0xf]
  %v28 = vld [vmem:[%s0 + $0x4] sm:$0xf]
  %v29 = vld [vmem:[%s1] sm:$0xf]
  %v30 = vld [vmem:[%s1 + $0x4] sm:$0xf]
  %v31 = vld [vmem:[%s1 + $0x8] sm:$0xf]
  %v32 = vld [vmem:[%s1 + $0xc] sm:$0xf]
  %v33 = vld [vmem:[%s1 + $0x10] sm:$0xf]
  %v34 = vld [vmem:[%s1 + $0x14] sm:$0xf]
  %v35 = vld [vmem:[%s1 + $0x18] sm:$0xf]
  %v36 = vld [vmem:[%s1 + $0x1c] sm:$0xf]
  %v37 = vld [vmem:[%s1 + $0x20] sm:$0xf]
  %v38 = vld [vmem:[%s1 + $0x24] sm:$0xf]
  %v39 = vld [vmem:[%s1 + $0x28] sm:$0xf]
  %v40 = vld [vmem:[%s1 + $0x2c] sm:$0xf]
  %v41 = vld [vmem:[%s1 + $0x30] sm:$0xf]
  %v42 = vld [vmem:[%s1 + $0x34] sm:$0xf]
  %v43 = vld [vmem:[%s1 + $0x38] sm:$0xf]
  %v44 = vld [vmem:[%s1 + $0x3c] sm:$0xf]
  %v45 = vld [vmem:[%s2] sm:$0x1]
  %v47 = vlaneseq
  %v48 = vshrl.u32 %v47, 7
  %v49 = vsub.s32 0, %v48
  %v50 = vrot.slane %v45, %v49
  %v54 = vunpack.c.l.b16 %v27
  %v55 = vunpack.c.l.b16 %v28
  %v56 = vpack.c.b16 %v55, %v54
  %v74 = vunpack.c.l.b16 %v29
  %v75 = vunpack.c.l.b16 %v30
  %v76 = vunpack.c.l.b16 %v31
  %v77 = vunpack.c.l.b16 %v32
  %v78 = vunpack.c.l.b16 %v33
  %v79 = vunpack.c.l.b16 %v34
  %v80 = vunpack.c.l.b16 %v35
  %v81 = vunpack.c.l.b16 %v36
  %v82 = vunpack.c.l.b16 %v37
  %v83 = vunpack.c.l.b16 %v38
  %v84 = vunpack.c.l.b16 %v39
  %v85 = vunpack.c.l.b16 %v40
  %v86 = vunpack.c.l.b16 %v41
  %v87 = vunpack.c.l.b16 %v42
  %v88 = vunpack.c.l.b16 %v43
  %v89 = vunpack.c.l.b16 %v44
  %v90 = vpack.c.b16 %v75, %v74
  %v91 = vpack.c.b16 %v77, %v76
  %v92 = vpack.c.b16 %v79, %v78
  %v93 = vpack.c.b16 %v81, %v80
  %v94 = vpack.c.b16 %v83, %v82
  %v95 = vpack.c.b16 %v85, %v84
  %v96 = vpack.c.b16 %v87, %v86
  %v97 = vpack.c.b16 %v89, %v88
  %106 = vmatprep.subr.bf16.mxu0 0
  %107 = vmatpush1.bf16.msra.mxu0 %v90
  %108 = vmatprep.subr.bf16.mxu0 0
  %109 = vmatpush1.bf16.msra.mxu0 %v91
  %110 = vmatprep.subr.bf16.mxu0 0
  %111 = vmatpush1.bf16.msra.mxu0 %v92
  %112 = vmatprep.subr.bf16.mxu0 0
  %113 = vmatpush1.bf16.msra.mxu0 %v93
  %114 = vmatprep.subr.bf16.mxu0 0
  %115 = vmatpush1.bf16.msra.mxu0 %v94
  %116 = vmatprep.subr.bf16.mxu0 0
  %117 = vmatpush1.bf16.msra.mxu0 %v95
  %118 = vmatprep.subr.bf16.mxu0 0
  %119 = vmatpush1.bf16.msra.mxu0 %v96
  %120 = vmatprep.subr.bf16.mxu0 0
  %121 = vmatpush1.bf16.msra.mxu0 %v97
  %122 = vmatprep.subr.bf16.mxu0 0
  %123 = vmatpush1.bf16.msra.mxu0 0
  %124 = vmatprep.subr.bf16.mxu0 0
  %125 = vmatpush1.bf16.msra.mxu0 0
  %126 = vmatprep.subr.bf16.mxu0 0
  %127 = vmatpush1.bf16.msra.mxu0 0
  %128 = vmatprep.subr.bf16.mxu0 0
  %129 = vmatpush1.bf16.msra.mxu0 0
  %130 = vmatprep.subr.bf16.mxu0 0
  %131 = vmatpush1.bf16.msra.mxu0 0
  %132 = vmatprep.subr.bf16.mxu0 0
  %133 = vmatpush1.bf16.msra.mxu0 0
  %134 = vmatprep.subr.bf16.mxu0 0
  %135 = vmatpush1.bf16.msra.mxu0 0
  %136 = vmatprep.subr.bf16.mxu0 0
  %137 = vmatpush1.bf16.msra.mxu0 0
  %138 = vmatprep.mubr.bf16.mxu0 0
  %139 = vmatmul.mubr.bf16.gmra.mrb[0].mxu0 %v56
  %v140 = vpop.f32.mrb[0].mxu0
  %v141 = vadd.f32 %v50, %v140
  %v142 = vpop.f32.mrb[0].mxu0
  %v143 = vpop.f32.mrb[0].mxu0
  %v144 = vadd.f32 %v50, %v143
  %v145 = vpop.f32.mrb[0].mxu0
  %146 = vdwg.mxu0
  %v147 = vmax.f32 %v141, 0.0
  %v148 = vmax.f32 %v144, 0.0
  %v149 = vpack.c.bf16 %v148, %v147
  %v150 = vld [vmem:[%s3] sm:$0xf]
  %v151 = vld [vmem:[%s3 + $0x4] sm:$0xf]
  %v152 = vld [vmem:[%s3 + $0x8] sm:$0xf]
  %v153 = vld [vmem:[%s3 + $0xc] sm:$0xf]
  %v154 = vld [vmem:[%s3 + $0x10] sm:$0xf]
  %v155 = vld [vmem:[%s3 + $0x14] sm:$0xf]
  %v156 = vld [vmem:[%s3 + $0x18] sm:$0xf]
  %v157 = vld [vmem:[%s3 + $0x1c] sm:$0xf]
  %v158 = vld [vmem:[%s3 + $0x20] sm:$0xf]
  %v159 = vld [vmem:[%s3 + $0x24] sm:$0xf]
  %v160 = vld [vmem:[%s3 + $0x28] sm:$0xf]
  %v161 = vld [vmem:[%s3 + $0x2c] sm:$0xf]
  %v162 = vld [vmem:[%s3 + $0x30] sm:$0xf]
  %v163 = vld [vmem:[%s3 + $0x34] sm:$0xf]
  %v164 = vld [vmem:[%s3 + $0x38] sm:$0xf]
  %v165 = vld [vmem:[%s3 + $0x3c] sm:$0xf]
  %v166 = vld [vmem:[%s4] sm:$0x1]
  %v168 = vlaneseq
  %v169 = vshrl.u32 %v168, 7
  %v170 = vsub.s32 0, %v169
  %v171 = vrot.slane %v166, %v170
  %v189 = vunpack.c.l.b16 %v150
  %v190 = vunpack.c.l.b16 %v151
  %v191 = vunpack.c.l.b16 %v152
  %v192 = vunpack.c.l.b16 %v153
  %v193 = vunpack.c.l.b16 %v154
  %v194 = vunpack.c.l.b16 %v155
  %v195 = vunpack.c.l.b16 %v156
  %v196 = vunpack.c.l.b16 %v157
  %v197 = vunpack.c.l.b16 %v158
  %v198 = vunpack.c.l.b16 %v159
  %v199 = vunpack.c.l.b16 %v160
  %v200 = vunpack.c.l.b16 %v161
  %v201 = vunpack.c.l.b16 %v162
  %v202 = vunpack.c.l.b16 %v163
  %v203 = vunpack.c.l.b16 %v164
  %v204 = vunpack.c.l.b16 %v165
  %v205 = vpack.c.b16 %v190, %v189
  %v206 = vpack.c.b16 %v192, %v191
  %v207 = vpack.c.b16 %v194, %v193
  %v208 = vpack.c.b16 %v196, %v195
  %v209 = vpack.c.b16 %v198, %v197
  %v210 = vpack.c.b16 %v200, %v199
  %v211 = vpack.c.b16 %v202, %v201
  %v212 = vpack.c.b16 %v204, %v203
  %221 = vmatprep.subr.bf16.mxu0 0
  %222 = vmatpush1.bf16.msra.mxu0 %v205
  %223 = vmatprep.subr.bf16.mxu0 0
  %224 = vmatpush1.bf16.msra.mxu0 %v206
  %225 = vmatprep.subr.bf16.mxu0 0
  %226 = vmatpush1.bf16.msra.mxu0 %v207
  %227 = vmatprep.subr.bf16.mxu0 0
  %228 = vmatpush1.bf16.msra.mxu0 %v208
  %229 = vmatprep.subr.bf16.mxu0 0
  %230 = vmatpush1.bf16.msra.mxu0 %v209
  %231 = vmatprep.subr.bf16.mxu0 0
  %232 = vmatpush1.bf16.msra.mxu0 %v210
  %233 = vmatprep.subr.bf16.mxu0 0
  %234 = vmatpush1.bf16.msra.mxu0 %v211
  %235 = vmatprep.subr.bf16.mxu0 0
  %236 = vmatpush1.bf16.msra.mxu0 %v212
  %237 = vmatprep.subr.bf16.mxu0 0
  %238 = vmatpush1.bf16.msra.mxu0 0
  %239 = vmatprep.subr.bf16.mxu0 0
  %240 = vmatpush1.bf16.msra.mxu0 0
  %241 = vmatprep.subr.bf16.mxu0 0
  %242 = vmatpush1.bf16.msra.mxu0 0
  %243 = vmatprep.subr.bf16.mxu0 0
  %244 = vmatpush1.bf16.msra.mxu0 0
  %245 = vmatprep.subr.bf16.mxu0 0
  %246 = vmatpush1.bf16.msra.mxu0 0
  %247 = vmatprep.subr.bf16.mxu0 0
  %248 = vmatpush1.bf16.msra.mxu0 0
  %249 = vmatprep.subr.bf16.mxu0 0
  %250 = vmatpush1.bf16.msra.mxu0 0
  %251 = vmatprep.subr.bf16.mxu0 0
  %252 = vmatpush1.bf16.msra.mxu0 0
  %253 = vmatprep.mubr.bf16.mxu0 0
  %254 = vmatmul.mubr.bf16.gmra.mrb[0].mxu0 %v149
  %v255 = vpop.f32.mrb[0].mxu0
  %v256 = vadd.f32 %v171, %v255
  %v257 = vpop.f32.mrb[0].mxu0
  %v258 = vpop.f32.mrb[0].mxu0
  %v259 = vadd.f32 %v171, %v258
  %v260 = vpop.f32.mrb[0].mxu0
  %261 = vdwg.mxu0
  %v262 = vmax.f32 %v256, 0.0
  %v263 = vmax.f32 %v259, 0.0
  %v264 = vpack.c.bf16 %v263, %v262
  %v265 = vld [vmem:[%s5] sm:$0xf]
  %v266 = vld [vmem:[%s5 + $0x4] sm:$0xf]
  %v267 = vld [vmem:[%s5 + $0x8] sm:$0xf]
  %v268 = vld [vmem:[%s5 + $0xc] sm:$0xf]
  %v269 = vld [vmem:[%s5 + $0x10] sm:$0xf]
  %v270 = vld [vmem:[%s5 + $0x14] sm:$0xf]
  %v271 = vld [vmem:[%s5 + $0x18] sm:$0xf]
  %v272 = vld [vmem:[%s5 + $0x1c] sm:$0xf]
  %v273 = vld [vmem:[%s5 + $0x20] sm:$0xf]
  %v274 = vld [vmem:[%s5 + $0x24] sm:$0xf]
  %v275 = vld [vmem:[%s5 + $0x28] sm:$0xf]
  %v276 = vld [vmem:[%s5 + $0x2c] sm:$0xf]
  %v277 = vld [vmem:[%s5 + $0x30] sm:$0xf]
  %v278 = vld [vmem:[%s5 + $0x34] sm:$0xf]
  %v279 = vld [vmem:[%s5 + $0x38] sm:$0xf]
  %v280 = vld [vmem:[%s5 + $0x3c] sm:$0xf]
  %v281 = vld [vmem:[%s6] sm:$0x1]
  %v283 = vlaneseq
  %v284 = vshrl.u32 %v283, 7
  %v285 = vsub.s32 0, %v284
  %v286 = vrot.slane %v281, %v285
  %v304 = vunpack.c.l.b16 %v265
  %v305 = vunpack.c.l.b16 %v266
  %v306 = vunpack.c.l.b16 %v267
  %v307 = vunpack.c.l.b16 %v268
  %v308 = vunpack.c.l.b16 %v269
  %v309 = vunpack.c.l.b16 %v270
  %v310 = vunpack.c.l.b16 %v271
  %v311 = vunpack.c.l.b16 %v272
  %v312 = vunpack.c.l.b16 %v273
  %v313 = vunpack.c.l.b16 %v274
  %v314 = vunpack.c.l.b16 %v275
  %v315 = vunpack.c.l.b16 %v276
  %v316 = vunpack.c.l.b16 %v277
  %v317 = vunpack.c.l.b16 %v278
  %v318 = vunpack.c.l.b16 %v279
  %v319 = vunpack.c.l.b16 %v280
  %v320 = vpack.c.b16 %v305, %v304
  %v321 = vpack.c.b16 %v307, %v306
  %v322 = vpack.c.b16 %v309, %v308
  %v323 = vpack.c.b16 %v311, %v310
  %v324 = vpack.c.b16 %v313, %v312
  %v325 = vpack.c.b16 %v315, %v314
  %v326 = vpack.c.b16 %v317, %v316
  %v327 = vpack.c.b16 %v319, %v318
  %336 = vmatprep.subr.bf16.mxu0 0
  %337 = vmatpush1.bf16.msra.mxu0 %v320
  %338 = vmatprep.subr.bf16.mxu0 0
  %339 = vmatpush1.bf16.msra.mxu0 %v321
  %340 = vmatprep.subr.bf16.mxu0 0
  %341 = vmatpush1.bf16.msra.mxu0 %v322
  %342 = vmatprep.subr.bf16.mxu0 0
  %343 = vmatpush1.bf16.msra.mxu0 %v323
  %344 = vmatprep.subr.bf16.mxu0 0
  %345 = vmatpush1.bf16.msra.mxu0 %v324
  %346 = vmatprep.subr.bf16.mxu0 0
  %347 = vmatpush1.bf16.msra.mxu0 %v325
  %348 = vmatprep.subr.bf16.mxu0 0
  %349 = vmatpush1.bf16.msra.mxu0 %v326
  %350 = vmatprep.subr.bf16.mxu0 0
  %351 = vmatpush1.bf16.msra.mxu0 %v327
  %352 = vmatprep.subr.bf16.mxu0 0
  %353 = vmatpush1.bf16.msra.mxu0 0
  %354 = vmatprep.subr.bf16.mxu0 0
  %355 = vmatpush1.bf16.msra.mxu0 0
  %356 = vmatprep.subr.bf16.mxu0 0
  %357 = vmatpush1.bf16.msra.mxu0 0
  %358 = vmatprep.subr.bf16.mxu0 0
  %359 = vmatpush1.bf16.msra.mxu0 0
  %360 = vmatprep.subr.bf16.mxu0 0
  %361 = vmatpush1.bf16.msra.mxu0 0
  %362 = vmatprep.subr.bf16.mxu0 0
  %363 = vmatpush1.bf16.msra.mxu0 0
  %364 = vmatprep.subr.bf16.mxu0 0
  %365 = vmatpush1.bf16.msra.mxu0 0
  %366 = vmatprep.subr.bf16.mxu0 0
  %367 = vmatpush1.bf16.msra.mxu0 0
  %368 = vmatprep.mubr.bf16.mxu0 0
  %369 = vmatmul.mubr.bf16.gmra.mrb[0].mxu0 %v264
  %v370 = vpop.f32.mrb[0].mxu0
  %v371 = vadd.f32 %v286, %v370
  %v372 = vpop.f32.mrb[0].mxu0
  %v373 = vpop.f32.mrb[0].mxu0
  %v374 = vadd.f32 %v286, %v373
  %v375 = vpop.f32.mrb[0].mxu0
  %376 = vdwg.mxu0
  %377 = vst [vmem:[%s7] sm:$0xff] %v371
  %378 = vst [vmem:[%s7 + $0x8] sm:$0xff] %v374
  // Predicated region
  $region30: #{_forward_jit.1} parent=0 // pred_check
    _
  $region31: #{_forward_jit.1} parent=0 // pred_check_branch
    %380 = sbr.rel (0) target = $region33
  $region32: #{_forward_jit.1} parent=0 // pred_region
    _
  $region33: #{_forward_jit.1} parent=0 // pred_fallthru
    _
  // Predicated region
  $region34: #{_forward_jit.1} parent=0 // pred_check
    _
  $region35: #{_forward_jit.1} parent=0 // pred_check_branch
    %382 = sbr.rel (0) target = $region37
  $region36: #{_forward_jit.1} parent=0 // pred_region
    _
  $region37: #{_forward_jit.1} parent=0 // pred_fallthru
    _

</llo_original>
